<compile_context>
chip_gen: v5e
topology: v5e:2x2
jax: 0.10.0
libtpu: 0.0.40
codegen_flags: <defaults>
</compile_context>

<pallas_src>
import jax
import jax.numpy as jnp
from jax.experimental import pallas as pl
from jax.experimental.pallas import tpu as pltpu


def _round_up(x, m):
    return ((x + m - 1) // m) * m


def _pack_params(params, context_dim):
    """Pack all weights/biases into one (rows, H) f32 buffer with 8-aligned rows."""
    w1 = jnp.asarray(params["w1"], jnp.float32)
    b1 = jnp.asarray(params["b1"], jnp.float32).reshape(-1)
    w2 = jnp.asarray(params["w2"], jnp.float32)
    b2 = jnp.asarray(params["b2"], jnp.float32).reshape(-1)
    w3 = jnp.asarray(params["w3"], jnp.float32).reshape(-1)
    b3 = jnp.asarray(params["b3"], jnp.float32).reshape(1, 1)

    d_in, h = w1.shape
    cd = context_dim
    f = d_in - cd

    # Sublane(8)-aligned row offsets so every in-kernel slice starts on a tile
    # boundary (no per-step sublane relayout of the weight slices).
    r_w1c = 0
    r_w1a = _round_up(r_w1c + cd, 8)
    r_b1 = _round_up(r_w1a + f, 8)
    r_w2 = _round_up(r_b1 + 1, 8)
    r_b2 = _round_up(r_w2 + h, 8)
    r_w3 = _round_up(r_b2 + 1, 8)
    total = _round_up(r_w3 + 1, 8)

    pack = jnp.zeros((total, h), jnp.float32)
    pack = pack.at[r_w1c:r_w1c + cd].set(w1[:cd])   # W1 rows hit by `context`
    pack = pack.at[r_w1a:r_w1a + f].set(w1[cd:])    # W1 rows hit by flattened action
    pack = pack.at[r_b1].set(b1)
    pack = pack.at[r_w2:r_w2 + h].set(w2)
    pack = pack.at[r_b2].set(b2)
    pack = pack.at[r_w3].set(w3)                     # w3 as a (1, H) row
    offs = (r_w1c, r_w1a, r_b1, r_w2, r_b2, r_w3)
    return pack, b3, offs, cd, f, h


def _make_kernel(cd, f, h, offs):
    r_w1c, r_w1a, r_b1, r_w2, r_b2, r_w3 = offs

    def kernel(ctx_ref, act_ref, wp_ref, b3_ref, o_ref):
        f32 = jnp.float32
        # Inputs may be streamed as bf16 (HBM-bandwidth option); math is f32.
        ctx = ctx_ref[...].astype(f32)
        act = act_ref[...].astype(f32)

        w1c = wp_ref[r_w1c:r_w1c + cd, :]   # (cd, H)
        w1a = wp_ref[r_w1a:r_w1a + f, :]    # (f,  H)
        b1 = wp_ref[r_b1:r_b1 + 1, :]       # (1,  H)
        w2 = wp_ref[r_w2:r_w2 + h, :]       # (H,  H)
        b2 = wp_ref[r_b2:r_b2 + 1, :]       # (1,  H)
        w3r = wp_ref[r_w3:r_w3 + 1, :]      # (1,  H)

        # Layer 1: concat fused via split weights. [ctx|act] @ W1 == ctx@W1c + act@W1a
        h1 = (
            jnp.dot(ctx, w1c, preferred_element_type=f32)
            + jnp.dot(act, w1a, preferred_element_type=f32)
            + b1
        )
        h1 = jnp.maximum(h1, 0.0)

        # Layer 2: Linear(H -> H) + ReLU
        h2 = jnp.dot(h1, w2, preferred_element_type=f32) + b2
        h2 = jnp.maximum(h2, 0.0)

        # Layer 3: (1,H) contracted against (tile,H) -> lane-dense (1, tile).
        # (Review item: if lower_as_mlir ever shows a full h2 transpose here it
        # rides the otherwise-idle XLU slot; kept as-is per review.)
        y = jax.lax.dot_general(
            w3r, h2,
            dimension_numbers=(((1,), (1,)), ((), ())),
            preferred_element_type=f32,
        )
        o_ref[...] = y + b3_ref[...]

    return kernel


def data_generating_network_forward(context, action_embed, params, *,
                                    block_b=2048, input_dtype=jnp.float32):
    """Fused Pallas forward pass of DataGeneratingNetwork.

    context:      (B, context_dim)
    action_embed: (B, n_features, feature_dim)
    params: dict with w1 (D_in,H), b1 (1,H), w2 (H,H), b2 (1,H), w3 (H,1), b3 (1,1)
    input_dtype:  jnp.float32 (default) or jnp.bfloat16 to halve input HBM traffic
                  for large B (loosen tolerances if used).
    returns:      (B, 1) float32
    """
    B = context.shape[0]
    context_dim = context.shape[1]
    act_flat = action_embed.reshape(B, -1)          # nn.Flatten(): metadata-only

    wpack, b3s, offs, cd, f, h = _pack_params(params, context_dim)
    assert act_flat.shape[1] == f, "action_embed flat dim inconsistent with w1"

    in_dt = jnp.dtype(input_dtype)
    ctx = context.astype(in_dt)
    act = act_flat.astype(in_dt)

    # ---------------- batch tiling ----------------
    block_b = max(128, _round_up(block_b, 128))
    if B <= block_b:
        tile = max(8, _round_up(B, 8))              # single tile (== full padded B)
    else:
        nsteps = -(-B // block_b)
        if nsteps % 2:                               # even #steps: both v7x TCs busy
            nsteps += 1
        tile = _round_up(-(-B // nsteps), 128)       # balanced, 128-aligned tiles
    Bp = _round_up(B, tile)
    if Bp != B:
        pad = Bp - B
        ctx = jnp.pad(ctx, ((0, pad), (0, 0)))
        act = jnp.pad(act, ((0, pad), (0, 0)))
    grid = (Bp // tile,)

    d_in = cd + f
    cost = pl.CostEstimate(
        flops=int(2 * B * (d_in * h + h * h + h)),
        transcendentals=0,
        bytes_accessed=int(B * (d_in * in_dt.itemsize + 4) + wpack.size * 4 + 4),
    )

    kernel = _make_kernel(cd, f, h, offs)
    out = pl.pallas_call(
        kernel,
        out_shape=jax.ShapeDtypeStruct((1, Bp), jnp.float32),
        grid=grid,
        in_specs=[
            pl.BlockSpec((tile, cd), lambda i: (i, 0)),      # context tile
            pl.BlockSpec((tile, f), lambda i: (i, 0)),       # flattened action tile
            pl.BlockSpec(wpack.shape, lambda i: (0, 0)),     # packed weights (resident)
            pl.BlockSpec((1, 1), lambda i: (0, 0)),          # b3
        ],
        out_specs=pl.BlockSpec((1, tile), lambda i: (0, i)), # lane-dense output
        compiler_params=pltpu.CompilerParams(
            dimension_semantics=("parallel",),               # shard B tiles over TCs
            vmem_limit_bytes=32 * 1024 * 1024,               # safe on v5e/v6e/v7x
        ),
        cost_estimate=cost,
    )(ctx, act, wpack, b3s)

    # (1, Bp) lane-dense -> (B, 1) to match the PyTorch module's output shape.
    return out[0, :B].reshape(B, 1)


def init_params(key, n_features=3, feature_dim=5, context_dim=10, hidden_layer_size=50):
    """Deterministic init mimicking nn.Linear default (uniform +/- 1/sqrt(fan_in))."""
    d_in = n_features * feature_dim + context_dim
    h = hidden_layer_size
    k1, k2, k3, k4, k5, k6 = jax.random.split(key, 6)

    def lin(kw, kb, fan_in, fan_out):
        bound = 1.0 / jnp.sqrt(float(fan_in))
        w = jax.random.uniform(kw, (fan_in, fan_out), jnp.float32, -bound, bound)
        b = jax.random.uniform(kb, (1, fan_out), jnp.float32, -bound, bound)
        return w, b

    w1, b1 = lin(k1, k2, d_in, h)
    w2, b2 = lin(k3, k4, h, h)
    w3, b3 = lin(k5, k6, h, 1)
    return {"w1": w1, "b1": b1, "w2": w2, "b2": b2, "w3": w3, "b3": b3}


def _reference_forward(context, action_embed, p):
    x = jnp.concatenate([context, action_embed.reshape(context.shape[0], -1)], axis=1)
    h1 = jnp.maximum(x @ p["w1"] + p["b1"], 0.0)
    h2 = jnp.maximum(h1 @ p["w2"] + p["b2"], 0.0)
    return h2 @ p["w3"] + p["b3"]


if __name__ == "__main__":
    n_features, feature_dim, context_dim, hidden = 3, 5, 10, 50

    key = jax.random.PRNGKey(0)
    k_ctx, k_act, k_params = jax.random.split(key, 3)
    params = init_params(k_params, n_features, feature_dim, context_dim, hidden)

    # 1) Small batch (single-tile path).
    B = 8
    context = jax.random.normal(k_ctx, (B, context_dim), jnp.float32)
    action_embed = jax.random.normal(k_act, (B, n_features, feature_dim), jnp.float32)
    out = jax.block_until_ready(
        data_generating_network_forward(context, action_embed, params)
    )
    ref = _reference_forward(context, action_embed, params)
    assert out.shape == (B, 1)
    assert jnp.allclose(out, ref, atol=1e-4, rtol=1e-4)

    # 2) Medium batch, default tiling (one big tile, amortized step cost).
    B2 = 1000
    k_ctx2, k_act2 = jax.random.split(jax.random.PRNGKey(1), 2)
    context2 = jax.random.normal(k_ctx2, (B2, context_dim), jnp.float32)
    action_embed2 = jax.random.normal(k_act2, (B2, n_features, feature_dim), jnp.float32)
    out2 = jax.block_until_ready(
        data_generating_network_forward(context2, action_embed2, params)
    )
    ref2 = _reference_forward(context2, action_embed2, params)
    assert out2.shape == (B2, 1)
    assert jnp.allclose(out2, ref2, atol=1e-4, rtol=1e-4)

    # 3) Force the multi-tile grid path (padding + parallel batch tiles +
    #    multi-block lane-dense output).
    out3 = jax.block_until_ready(
        data_generating_network_forward(context2, action_embed2, params, block_b=256)
    )
    assert out3.shape == (B2, 1)
    assert jnp.allclose(out3, ref2, atol=1e-4, rtol=1e-4)

    # 4) bf16 input streaming (HBM-bandwidth option) -- looser tolerance.
    out4 = jax.block_until_ready(
        data_generating_network_forward(context2, action_embed2, params,
                                        input_dtype=jnp.bfloat16)
    )
    assert out4.shape == (B2, 1)
    assert jnp.allclose(out4, ref2, atol=5e-2, rtol=5e-2)

    print("KERNEL_OK")
</pallas_src>

<mosaic_0001>
module attributes {stable_mosaic.version = 11 : i64} {
  func.func @kernel(%arg0: i32, %arg1: memref<8x10xf32, #tpu.memory_space<vmem>>, %arg2: memref<8x15xf32, #tpu.memory_space<vmem>>, %arg3: memref<112x50xf32, #tpu.memory_space<vmem>>, %arg4: memref<1x1xf32, #tpu.memory_space<vmem>>, %arg5: memref<1x8xf32, #tpu.memory_space<vmem>>) attributes {dimension_semantics = [#tpu.dimension_semantics<parallel>], iteration_bounds = array<i64: 1>, scalar_prefetch = 0 : i64, scratch_operands = 0 : i64, tpu.core_type = #tpu.core_type<tc>, window_params = [{transform_indices = @transform_0, window_bounds = array<i64: 8, 10>}, {transform_indices = @transform_1, window_bounds = array<i64: 8, 15>}, {pipeline_mode = #tpu.pipeline_mode<synchronous>, transform_indices = @transform_2, window_bounds = array<i64: 112, 50>}, {pipeline_mode = #tpu.pipeline_mode<synchronous>, transform_indices = @transform_3, window_bounds = array<i64: 1, 1>}, {transform_indices = @transform_4, window_bounds = array<i64: 1, 8>}]} {
    %c0 = arith.constant 0 : index
    %c0_0 = arith.constant 0 : index
    %0 = vector.load %arg1[%c0, %c0_0] : memref<8x10xf32, #tpu.memory_space<vmem>>, vector<8x10xf32>
    %c0_1 = arith.constant 0 : index
    %c0_2 = arith.constant 0 : index
    %1 = vector.load %arg2[%c0_1, %c0_2] : memref<8x15xf32, #tpu.memory_space<vmem>>, vector<8x15xf32>
    %c0_3 = arith.constant 0 : index
    %c0_4 = arith.constant 0 : index
    %2 = vector.load %arg3[%c0_3, %c0_4] : memref<112x50xf32, #tpu.memory_space<vmem>>, vector<10x50xf32>
    %c16 = arith.constant 16 : index
    %c0_5 = arith.constant 0 : index
    %3 = vector.load %arg3[%c16, %c0_5] : memref<112x50xf32, #tpu.memory_space<vmem>>, vector<15x50xf32>
    %c32 = arith.constant 32 : index
    %c0_6 = arith.constant 0 : index
    %4 = vector.load %arg3[%c32, %c0_6] : memref<112x50xf32, #tpu.memory_space<vmem>>, vector<1x50xf32>
    %c40 = arith.constant 40 : index
    %c0_7 = arith.constant 0 : index
    %5 = vector.load %arg3[%c40, %c0_7] : memref<112x50xf32, #tpu.memory_space<vmem>>, vector<50x50xf32>
    %c96 = arith.constant 96 : index
    %c0_8 = arith.constant 0 : index
    %6 = vector.load %arg3[%c96, %c0_8] : memref<112x50xf32, #tpu.memory_space<vmem>>, vector<1x50xf32>
    %c104 = arith.constant 104 : index
    %c0_9 = arith.constant 0 : index
    %7 = vector.load %arg3[%c104, %c0_9] : memref<112x50xf32, #tpu.memory_space<vmem>>, vector<1x50xf32>
    %cst = arith.constant dense<0.000000e+00> : vector<8x50xf32>
    %8 = tpu.matmul %0, %2, %cst {dimension_numbers = #tpu.dot_dimension_numbers<[1], [0], [0], [1], [0, 0, 1, 1], [], []>} : vector<8x10xf32>, vector<10x50xf32>, vector<8x50xf32> -> vector<8x50xf32>
    %cst_10 = arith.constant dense<0.000000e+00> : vector<8x50xf32>
    %9 = tpu.matmul %1, %3, %cst_10 {dimension_numbers = #tpu.dot_dimension_numbers<[1], [0], [0], [1], [0, 0, 1, 1], [], []>} : vector<8x15xf32>, vector<15x50xf32>, vector<8x50xf32> -> vector<8x50xf32>
    %10 = arith.addf %8, %9 : vector<8x50xf32>
    %11 = vector.broadcast %4 : vector<1x50xf32> to vector<8x50xf32>
    %12 = arith.addf %10, %11 : vector<8x50xf32>
    %cst_11 = arith.constant 0.000000e+00 : f32
    %13 = vector.broadcast %cst_11 : f32 to vector<8x50xf32>
    %14 = arith.maximumf %12, %13 : vector<8x50xf32>
    %cst_12 = arith.constant dense<0.000000e+00> : vector<8x50xf32>
    %15 = tpu.matmul %14, %5, %cst_12 {dimension_numbers = #tpu.dot_dimension_numbers<[1], [0], [0], [1], [0, 0, 1, 1], [], []>} : vector<8x50xf32>, vector<50x50xf32>, vector<8x50xf32> -> vector<8x50xf32>
    %16 = vector.broadcast %6 : vector<1x50xf32> to vector<8x50xf32>
    %17 = arith.addf %15, %16 : vector<8x50xf32>
    %cst_13 = arith.constant 0.000000e+00 : f32
    %18 = vector.broadcast %cst_13 : f32 to vector<8x50xf32>
    %19 = arith.maximumf %17, %18 : vector<8x50xf32>
    %cst_14 = arith.constant dense<0.000000e+00> : vector<1x8xf32>
    %20 = tpu.matmul %7, %19, %cst_14 {dimension_numbers = #tpu.dot_dimension_numbers<[1], [1], [0], [0], [0, 0, 1, 0], [], []>} : vector<1x50xf32>, vector<8x50xf32>, vector<1x8xf32> -> vector<1x8xf32>
    %c0_15 = arith.constant 0 : index
    %c0_16 = arith.constant 0 : index
    %21 = vector.load %arg4[%c0_15, %c0_16] : memref<1x1xf32, #tpu.memory_space<vmem>>, vector<1x1xf32>
    %22 = vector.broadcast %21 : vector<1x1xf32> to vector<1x8xf32>
    %23 = arith.addf %20, %22 : vector<1x8xf32>
    %c0_17 = arith.constant 0 : index
    %c0_18 = arith.constant 0 : index
    %24 = vector.load %arg5[%c0_17, %c0_18] : memref<1x8xf32, #tpu.memory_space<vmem>>, vector<1x8xf32>
    tpu.vector_store %arg5[%c0_17, %c0_18], %23 {strides = array<i32>} : memref<1x8xf32, #tpu.memory_space<vmem>>, vector<1x8xf32>,
    return
  }
  func.func @transform_0(%arg0: i32) -> (i32, i32) {
    %c0_i32 = arith.constant 0 : i32
    %c0_i32_0 = arith.constant 0 : i32
    return %arg0, %c0_i32 : i32, i32
  }
  func.func @transform_1(%arg0: i32) -> (i32, i32) {
    %c0_i32 = arith.constant 0 : i32
    %c0_i32_0 = arith.constant 0 : i32
    return %arg0, %c0_i32 : i32, i32
  }
  func.func @transform_2(%arg0: i32) -> (i32, i32) {
    %c0_i32 = arith.constant 0 : i32
    %c0_i32_0 = arith.constant 0 : i32
    %c0_i32_1 = arith.constant 0 : i32
    return %c0_i32, %c0_i32_0 : i32, i32
  }
  func.func @transform_3(%arg0: i32) -> (i32, i32) {
    %c0_i32 = arith.constant 0 : i32
    %c0_i32_0 = arith.constant 0 : i32
    %c0_i32_1 = arith.constant 0 : i32
    return %c0_i32, %c0_i32_0 : i32, i32
  }
  func.func @transform_4(%arg0: i32) -> (i32, i32) {
    %c0_i32 = arith.constant 0 : i32
    %c0_i32_0 = arith.constant 0 : i32
    return %c0_i32, %arg0 : i32, i32
  }
}

</mosaic_0001>

<llo_original>
// kernel: tpu_custom_call.1
$region0: #{tpu_custom_call.1}
  #allocation0 [shape = 'u32[]', space=smem, size = 0x4, offset = 0x4, fixed_abs, tag = 'smem constant byte address 0x4 - core index']
  #allocation1 [shape = 'u32[72,128]{1,0:T(1,128)}', space=vmem, size = 0x9000, scoped, tag = 'internal scratch']
  #allocation2 [shape = 'f32[1,1]{1,0:T(1,128)S(1)}', space=vmem, size = 0x200, scoped, tag = 'scoped memory for tpu_custom_call.1']
  %s0 = inlined_call_operand.vmem [shape: f32[8,10], index: 0, kind: input, shape index: {}]
  %s1 = inlined_call_operand.vmem [shape: f32[8,15], index: 1, kind: input, shape index: {}]
  %s2 = inlined_call_operand.vmem [shape: f32[112,50], index: 2, kind: input, shape index: {}]
  %s3 = inlined_call_operand.<no memory space> [shape: f32[1,1], index: 3, kind: input, shape index: {}]
  %s4 = inlined_call_operand.hbm [shape: f32[1,8], index: 4, kind: output, shape index: {}]
  %s5 = sld [smem:[#allocation0]]
  $region26: #{tpu_custom_call.1} parent=0
    _
  %s7 = ssub.s32 1, %s5
  %s8 = scalar_select 0, %s7, %s5
  %v9 = vstv %s3
  %10 = vst [vmem:[#allocation2] sm:$0x1] %v9
  $region1: #{tpu_custom_call.1} parent=0
    #allocation3 [shape = 'u8[512]{0}', space=vmem, size = 0x400, scoped, tag = 'output window, operand 0, single buffered']
    #allocation4 [shape = 's32[1]{0}', space=sflag, size = 0x4, scoped, tag = 'scoped memory for tpu_custom_call.1']
    %11 = vsyncpa [#allocation4], 0
    // Predicated region
    $region2: #{tpu_custom_call.1} parent=1 // pred_check
      _
    $region3: #{tpu_custom_call.1} parent=1 // pred_check_branch
      %13 = sbr.rel (0) target = $region5
    $region4: #{tpu_custom_call.1} parent=1 // pred_region
      _
    $region5: #{tpu_custom_call.1} parent=1 // pred_fallthru
      _
    // Predicated region
    $region6: #{tpu_custom_call.1} parent=1 // pred_check
      _
    $region7: #{tpu_custom_call.1} parent=1 // pred_check_branch
      %15 = sbr.rel (0) target = $region9
    $region8: #{tpu_custom_call.1} parent=1 // pred_region
      _
    $region9: #{tpu_custom_call.1} parent=1 // pred_fallthru
      _
    // Predicated region
    $region10: #{tpu_custom_call.1} parent=1 // pred_check
      _
    $region11: #{tpu_custom_call.1} parent=1 // pred_check_branch
      %17 = sbr.rel (0) target = $region13
    $region12: #{tpu_custom_call.1} parent=1 // pred_region
      _
    $region13: #{tpu_custom_call.1} parent=1 // pred_fallthru
      _
    // Predicated region
    $region14: #{tpu_custom_call.1} parent=1 // pred_check
      _
    $region15: #{tpu_custom_call.1} parent=1 // pred_check_branch
      %19 = sbr.rel (0) target = $region17
    $region16: #{tpu_custom_call.1} parent=1 // pred_region
      _
    $region17: #{tpu_custom_call.1} parent=1 // pred_fallthru
      _
    %v20 = vld [vmem:[%s0] sm:$0xff]
    %v21 = vld [vmem:[%s1] sm:$0xff]
    %v22 = vld [vmem:[%s2] sm:$0xff]
    %v23 = vld [vmem:[%s2 + $0x8] sm:$0x3]
    %v24 = vld [vmem:[%s2 + $0x10] sm:$0xff]
    %v25 = vld [vmem:[%s2 + $0x18] sm:$0x7f]
    %v26 = vld [vmem:[%s2 + $0x20] sm:$0x1]
    %v27 = vld [vmem:[%s2 + $0x28] sm:$0xff]
    %v28 = vld [vmem:[%s2 + $0x30] sm:$0xff]
    %v29 = vld [vmem:[%s2 + $0x38] sm:$0xff]
    %v30 = vld [vmem:[%s2 + $0x40] sm:$0xff]
    %v31 = vld [vmem:[%s2 + $0x48] sm:$0xff]
    %v32 = vld [vmem:[%s2 + $0x50] sm:$0xff]
    %v33 = vld [vmem:[%s2 + $0x58] sm:$0x3]
    %v34 = vld [vmem:[%s2 + $0x60] sm:$0x1]
    %v35 = vld [vmem:[%s2 + $0x68] sm:$0x1]
    %vm36 = vcmask 121856
    %v38 = vsel %vm36, %v21, 0
    %vm40 = vcmask 1046528
    %v42 = vsel %vm40, %v25, 0
    %44 = vmatpush.msra.mxu0 0.0
    %45 = vmatpush.msra.mxu0 0.0
    %46 = vmatpush.msra.mxu0 0.0
    %47 = vmatpush.msra.mxu0 0.0
    %48 = vmatpush.msra.mxu0 0.0
    %49 = vmatpush.msra.mxu0 0.0
    %50 = vmatpush.msra.mxu0 0.0
    %51 = vmatpush.msra.mxu0 0.0
    %52 = vmatpush.msra.mxu0 0.0
    %53 = vmatpush.msra.mxu0 0.0
    %54 = vmatpush.msra.mxu0 0.0
    %55 = vmatpush.msra.mxu0 0.0
    %56 = vmatpush.msra.mxu0 0.0
    %57 = vmatpush.msra.mxu0 0.0
    %58 = vmatpush.msra.mxu0 %v42
    %59 = vmatpush.msra.mxu0 %v24
    %60 = vmatmul.f32.gmra.mxu0 %v38
    %v61 = vpop.f32.mrf.mxu0
    %v62 = vadd.f32 0.0, %v61
    %63 = vdwg.mxu0
    %vm64 = vcmask 80896
    %v66 = vsel %vm64, %v20, 0
    %vm68 = vcmask 1041408
    %v70 = vsel %vm68, %v23, 0
    %72 = vmatpush.msra.mxu0 0.0
    %73 = vmatpush.msra.mxu0 0.0
    %74 = vmatpush.msra.mxu0 0.0
    %75 = vmatpush.msra.mxu0 0.0
    %76 = vmatpush.msra.mxu0 0.0
    %77 = vmatpush.msra.mxu0 0.0
    %78 = vmatpush.msra.mxu0 0.0
    %79 = vmatpush.msra.mxu0 0.0
    %80 = vmatpush.msra.mxu0 0.0
    %81 = vmatpush.msra.mxu0 0.0
    %82 = vmatpush.msra.mxu0 0.0
    %83 = vmatpush.msra.mxu0 0.0
    %84 = vmatpush.msra.mxu0 0.0
    %85 = vmatpush.msra.mxu0 0.0
    %86 = vmatpush.msra.mxu0 %v70
    %87 = vmatpush.msra.mxu0 %v22
    %88 = vmatmul.f32.gmra.mxu0 %v66
    %v89 = vpop.f32.mrf.mxu0
    %v90 = vadd.f32 %v62, %v89
    %91 = vdwg.mxu0
    %v92 = vperm.slane %v26, 0
    %v93 = vadd.f32 %v90, %v92
    %v94 = vmax.f32 %v93, 0.0
    %v95 = vperm.slane %v34, 0
    %vm96 = vcmask 408576
    %v98 = vsel %vm96, %v94, 0
    %v101 = vsel %vm68, %v33, 0
    %103 = vmatpush.msra.mxu0 0.0
    %104 = vmatpush.msra.mxu0 0.0
    %105 = vmatpush.msra.mxu0 0.0
    %106 = vmatpush.msra.mxu0 0.0
    %107 = vmatpush.msra.mxu0 0.0
    %108 = vmatpush.msra.mxu0 0.0
    %109 = vmatpush.msra.mxu0 0.0
    %110 = vmatpush.msra.mxu0 0.0
    %111 = vmatpush.msra.mxu0 0.0
    %112 = vmatpush.msra.mxu0 %v101
    %113 = vmatpush.msra.mxu0 %v32
    %114 = vmatpush.msra.mxu0 %v31
    %115 = vmatpush.msra.mxu0 %v30
    %116 = vmatpush.msra.mxu0 %v29
    %117 = vmatpush.msra.mxu0 %v28
    %118 = vmatpush.msra.mxu0 %v27
    %119 = vmatmul.f32.gmra.mxu0 %v98
    %v120 = vpop.f32.mrf.mxu0
    %v121 = vadd.f32 %v95, %v120
    %122 = vdwg.mxu0
    %v123 = vmax.f32 %v121, 0.0
    %v124 = vld [vmem:[#allocation2] sm:$0x1]
    %126 = vset.pattern.permute.xlu0 0
    %127 = vperm.xlu0 %126, %v124
    %v128 = vpop.permute.xlu0 %127
    %v130 = vperm.slane %v128, 0
    %v132 = vsel %vm96, %v35, 0
    %v135 = vsel %vm96, %v123, 0
    %137 = vmatpush.xpose.msra.mxu0 0.0
    %138 = vmatpush.xpose.msra.mxu0 0.0
    %139 = vmatpush.xpose.msra.mxu0 0.0
    %140 = vmatpush.xpose.msra.mxu0 0.0
    %141 = vmatpush.xpose.msra.mxu0 0.0
    %142 = vmatpush.xpose.msra.mxu0 0.0
    %143 = vmatpush.xpose.msra.mxu0 0.0
    %144 = vmatpush.xpose.msra.mxu0 0.0
    %145 = vmatpush.xpose.msra.mxu0 0.0
    %146 = vmatpush.xpose.msra.mxu0 0.0
    %147 = vmatpush.xpose.msra.mxu0 0.0
    %148 = vmatpush.xpose.msra.mxu0 0.0
    %149 = vmatpush.xpose.msra.mxu0 0.0
    %150 = vmatpush.xpose.msra.mxu0 0.0
    %151 = vmatpush.xpose.msra.mxu0 0.0
    %152 = vmatpush.xpose.msra.mxu0 %v135
    %153 = vmatmul.f32.gmra.mxu0 %v132
    %v154 = vpop.f32.mrf.mxu0
    %v155 = vadd.f32 %v130, %v154
    %156 = vdwg.mxu0
    %vm157 = vcmask 57344
    %158 = vst.msk [vmem:[#allocation3] sm:$0x1] %vm157, %v155
    // Predicated region
    $region18: #{tpu_custom_call.1} parent=1 // pred_check
      _
    $region19: #{tpu_custom_call.1} parent=1 // pred_check_branch
      %160 = sbr.rel (0) target = $region21
    $region20: #{tpu_custom_call.1} parent=1 // pred_region
      %162 = vsyncadd [#allocation4], 0
      %s164 = sshll.u32 [#allocation3], 4
      %s165 = int_to_ptr.vmem [resolvable:$true] %s164
      %s166 = sshll.u32 %s4, 4
      %s167 = int_to_ptr.hbm [resolvable:$true] %s166
      %169 = dma.vmem_to_hbm [thread:$0]  %s165, 16, %s167, [#allocation4]
    $region21: #{tpu_custom_call.1} parent=1 // pred_fallthru
      _
    // Predicated region
    $region22: #{tpu_custom_call.1} parent=1 // pred_check
      _
    $region23: #{tpu_custom_call.1} parent=1 // pred_check_branch
      %171 = sbr.rel (0) target = $region25
    $region24: #{tpu_custom_call.1} parent=1 // pred_region
      %173 = dma.done [#allocation4], 16
    $region25: #{tpu_custom_call.1} parent=1 // pred_fallthru
      _
    %174 = vsyncpa [#allocation4], 1

</llo_original>
